<compile_context>
chip_gen: v7x
topology: tpu7x:2x2x1
jax: 0.10.0
libtpu: 0.0.40
codegen_flags: <defaults>
</compile_context>

<pallas_src>
import functools
import math

import jax
import jax.numpy as jnp
from jax.experimental import pallas as pl
from jax.experimental.pallas import tpu as pltpu

# ---------------- model constants ----------------
INPUT_DIM = 5
HIDDEN_DIMS = [64, 32, 16]
BN_EPS = 1e-5
PHYS_A = 55.83
PHYS_B = -2.259
LOG_CLAMP = math.log(1e-6)  # clamp(delta_w, 1e-6) <=> clamp(logit, log(1e-6))

DEFAULT_TILE = 16384  # lanes (batch elements) per grid step; multiple of 128
DEFAULT_SLAB = 2048   # lanes per inner-loop slab; bounds live intermediates


def _round_up(x, m):
    return ((x + m - 1) // m) * m


def _choose_tiling(batch, tile, slab):
    """Pick (tile_lanes, slab_lanes, padded_batch)."""
    tb = min(tile, _round_up(batch, 128))
    sb = min(slab, tb)
    tb = _round_up(tb, sb)
    b_pad = _round_up(batch, tb)
    # v7x megacore: keep >= 2 grid steps when the work spans more than one slab, so
    # dimension_semantics=("parallel",) can shard tiles across both TensorCores.
    if b_pad == tb and tb >= 2 * sb:
        tb = _round_up(tb // 2, sb)
        b_pad = _round_up(batch, tb)
    return tb, sb, b_pad


def _pinn_kernel(
    x_ref,                        # (slabs_per_tile, INPUT_DIM, slab) f32
    w1_ref, b1_ref,               # (64, 5)  [bf16|f32], (64, 1) f32   -- BN folded in
    w2_ref, b2_ref,               # (32, 64), (32, 1)
    w3_ref, b3_ref,               # (16, 32), (16, 1)
    wdc_ref, bd_ref,              # (16, 1) f32 head column, (1, 1) f32
    nf_ref, dw_ref,               # (slabs_per_tile, 1, slab) f32 each
):
    """Fused forward: 3x (Linear+BN(eval) -> ReLU) -> head -> exp -> physics.

    Batch lives on the lane (last) axis.  The inner fori_loop walks the leading slab axis
    so intermediates are bounded per-slab; matmuls run on the MXU with f32 accumulation,
    the (1x16) head runs as a VPU broadcast-mul + XLU sublane reduce."""
    slabs_per_tile = x_ref.shape[0]

    # Hoist the (tiny) weights/biases out of the slab loop.
    w1 = w1_ref[...]
    b1 = b1_ref[...]
    w2 = w2_ref[...]
    b2 = b2_ref[...]
    w3 = w3_ref[...]
    b3 = b3_ref[...]
    wdc = wdc_ref[...]            # (16, 1) f32
    bd = bd_ref[...]              # (1, 1)  f32

    def slab_body(s, carry):
        xs = x_ref[s]                                                     # (5, slab) f32

        h = jnp.dot(w1, xs.astype(w1.dtype),
                    preferred_element_type=jnp.float32) + b1              # (64, slab) f32
        h = jnp.maximum(h, 0.0)

        h = jnp.dot(w2, h.astype(w2.dtype),
                    preferred_element_type=jnp.float32) + b2              # (32, slab)
        h = jnp.maximum(h, 0.0)

        h = jnp.dot(w3, h.astype(w3.dtype),
                    preferred_element_type=jnp.float32) + b3              # (16, slab)
        h = jnp.maximum(h, 0.0)

        # (1x16) head off the MXU: broadcast multiply + sublane reduce.
        logit = jnp.sum(wdc * h, axis=0, keepdims=True) + bd              # (1, slab) f32

        dw_ref[s] = jnp.exp(logit)                                        # delta_w
        # Nf = a * clamp(delta_w, 1e-6)^b == a * exp(b * max(logit, log(1e-6)))
        nf_ref[s] = PHYS_A * jnp.exp(PHYS_B * jnp.maximum(logit, LOG_CLAMP))
        return carry

    jax.lax.fori_loop(0, slabs_per_tile, slab_body, 0)


def init_params(key, input_dim=INPUT_DIM, hidden_dims=HIDDEN_DIMS):
    """Mirror PINNModel._initialize_weights and fold BatchNorm1d (eval) into the Linear.

    Linear: kaiming_normal(fan_in, relu) -> std = sqrt(2/fan_in), bias = 0.
    BatchNorm1d: gamma=1, beta=0, running_mean=0, running_var=1.
    Folding:  W' = (gamma/sqrt(var+eps)) * W ;  b' = (gamma/sqrt(var+eps)) * (b - mean) + beta.
    Weights are stored in torch (out_dim, in_dim) layout; biases as (out_dim, 1).
    The head is stored as a column (in_dim, 1) for the VPU/XLU path.  All f32."""
    params = {}
    prev = input_dim
    keys = jax.random.split(key, len(hidden_dims) + 1)
    for i, h in enumerate(hidden_dims):
        std = (2.0 / prev) ** 0.5
        w = std * jax.random.normal(keys[i], (h, prev), jnp.float32)   # (out, in)
        b = jnp.zeros((h,), jnp.float32)
        gamma = jnp.ones((h,), jnp.float32)
        beta = jnp.zeros((h,), jnp.float32)
        run_mean = jnp.zeros((h,), jnp.float32)
        run_var = jnp.ones((h,), jnp.float32)
        scale = gamma / jnp.sqrt(run_var + BN_EPS)
        params[f"w{i + 1}"] = w * scale[:, None]
        params[f"b{i + 1}"] = (scale * (b - run_mean) + beta)[:, None]  # (out, 1)
        prev = h
    std = (2.0 / prev) ** 0.5
    wd = std * jax.random.normal(keys[-1], (1, prev), jnp.float32)      # (1, 16)
    params["wd_col"] = wd.T                                             # (16, 1) f32
    params["bd"] = jnp.zeros((1, 1), jnp.float32)
    return params


def cast_matmul_weights(params, dtype=jnp.bfloat16):
    """Store only the MXU operands (w1..w3) in `dtype`; biases and the head stay f32."""
    out = dict(params)
    for i in range(1, len(HIDDEN_DIMS) + 1):
        out[f"w{i}"] = params[f"w{i}"].astype(dtype)
    return out


@functools.partial(jax.jit, static_argnames=("tile", "slab"))
def pinn_forward(x, params, tile=DEFAULT_TILE, slab=DEFAULT_SLAB):
    """Fused Pallas forward. x: (batch, INPUT_DIM).  Returns {'nf_pred', 'delta_w'}: (batch,)."""
    assert tile % 128 == 0 and slab % 128 == 0, "tile/slab must be multiples of 128 lanes"
    batch = x.shape[0]

    tb, sb, b_pad = _choose_tiling(batch, tile, slab)
    slabs_per_tile = tb // sb
    n_slabs = b_pad // sb
    grid = (b_pad // tb,)

    # Single fused host copy under jit: cast + pad + reshape + transpose to
    # (n_slabs, INPUT_DIM, slab) with the batch on the lane axis.  Padded lanes are zeros
    # -> finite outputs (exp(bias)) in the discarded tail.
    x_p = jnp.pad(x.astype(jnp.float32), ((0, b_pad - batch), (0, 0)))    # (b_pad, 5)
    x_t = x_p.reshape(n_slabs, sb, INPUT_DIM).transpose(0, 2, 1)          # (n_slabs, 5, slab)

    w_spec = lambda arr: pl.BlockSpec(arr.shape, lambda i: (0, 0))        # VMEM-resident weights
    out_spec = pl.BlockSpec((slabs_per_tile, 1, sb), lambda i: (i, 0, 0))

    nf, dw = pl.pallas_call(
        _pinn_kernel,
        out_shape=(
            jax.ShapeDtypeStruct((n_slabs, 1, sb), jnp.float32),   # nf_pred
            jax.ShapeDtypeStruct((n_slabs, 1, sb), jnp.float32),   # delta_w
        ),
        grid=grid,
        in_specs=[
            pl.BlockSpec((slabs_per_tile, INPUT_DIM, sb), lambda i: (i, 0, 0)),
            w_spec(params["w1"]), w_spec(params["b1"]),
            w_spec(params["w2"]), w_spec(params["b2"]),
            w_spec(params["w3"]), w_spec(params["b3"]),
            w_spec(params["wd_col"]), w_spec(params["bd"]),
        ],
        out_specs=(out_spec, out_spec),
        compiler_params=pltpu.CompilerParams(
            dimension_semantics=("parallel",),
        ),
    )(
        x_t,
        params["w1"], params["b1"],
        params["w2"], params["b2"],
        params["w3"], params["b3"],
        params["wd_col"], params["bd"],
    )

    # (n_slabs, 1, slab) is contiguous in batch order -> reshape is free.
    return {"nf_pred": nf.reshape(b_pad)[:batch], "delta_w": dw.reshape(b_pad)[:batch]}


def _reference_forward(x, params):
    """Pure-JAX reference (torch eval-mode semantics).  Mirrors the kernel's matmul-operand
    dtype (taken from params['w1'].dtype) so comparisons isolate the kernel itself; with f32
    weights this is the exact f32 model."""
    mm_dtype = params["w1"].dtype
    h = x.astype(jnp.float32)
    for i in range(1, len(HIDDEN_DIMS) + 1):
        w = params[f"w{i}"].astype(jnp.float32)                    # (out, in) (bf16-rounded or exact)
        h = jnp.dot(h.astype(mm_dtype).astype(jnp.float32), w.T,
                    precision=jax.lax.Precision.HIGHEST) + params[f"b{i}"][:, 0]
        h = jnp.maximum(h, 0.0)
    logit = jnp.dot(h, params["wd_col"][:, 0],
                    precision=jax.lax.Precision.HIGHEST) + params["bd"][0, 0]
    delta_w = jnp.exp(logit)
    nf = PHYS_A * jnp.power(jnp.maximum(delta_w, 1e-6), PHYS_B)
    return {"nf_pred": nf, "delta_w": delta_w}


if __name__ == "__main__":
    key = jax.random.PRNGKey(0)
    pkey, xkey, xkey2 = jax.random.split(key, 3)

    params_f32 = init_params(pkey)                         # exact f32 (BN folded)
    params_bf16 = cast_matmul_weights(params_f32)          # bf16 MXU operands (default fast path)

    # ---- small batch, f32 matmul operands: tight check against the exact reference ----
    batch = 8
    x = jax.random.normal(xkey, (batch, INPUT_DIM), jnp.float32)
    out_f32 = pinn_forward(x, params_f32)
    jax.block_until_ready(out_f32)
    ref_f32 = _reference_forward(x, params_f32)
    assert out_f32["nf_pred"].shape == (batch,)
    assert out_f32["delta_w"].shape == (batch,)
    assert jnp.allclose(out_f32["delta_w"], ref_f32["delta_w"], rtol=1e-3, atol=1e-5)
    assert jnp.allclose(out_f32["nf_pred"], ref_f32["nf_pred"], rtol=3e-3, atol=1e-4)

    # ---- small batch, bf16 matmul operands (production path) ----
    out_bf = pinn_forward(x, params_bf16)
    jax.block_until_ready(out_bf)
    ref_bf = _reference_forward(x, params_bf16)            # mimics bf16 operand rounding
    assert jnp.allclose(out_bf["delta_w"], ref_bf["delta_w"], rtol=3e-2, atol=1e-5)
    assert jnp.allclose(out_bf["nf_pred"], ref_bf["nf_pred"], rtol=7e-2, atol=1e-4)
    # sanity vs the exact f32 model (bf16 operands shift results by ~O(1%) pre-exp)
    assert jnp.allclose(out_bf["delta_w"], ref_f32["delta_w"], rtol=1.5e-1, atol=1e-4)
    assert jnp.allclose(out_bf["nf_pred"], ref_f32["nf_pred"], rtol=3e-1, atol=1e-3)

    # ---- large batch: multiple grid tiles, multiple slabs per tile, padded tail ----
    big = 9000
    xb = jax.random.normal(xkey2, (big, INPUT_DIM), jnp.float32)
    out_b = pinn_forward(xb, params_bf16)
    jax.block_until_ready(out_b)
    ref_b = _reference_forward(xb, params_bf16)
    assert out_b["nf_pred"].shape == (big,)
    assert out_b["delta_w"].shape == (big,)
    assert jnp.allclose(out_b["delta_w"], ref_b["delta_w"], rtol=3e-2, atol=1e-5)
    assert jnp.allclose(out_b["nf_pred"], ref_b["nf_pred"], rtol=7e-2, atol=1e-4)

    print("KERNEL_OK")
</pallas_src>

<mosaic_0001>
module attributes {stable_mosaic.version = 11 : i64} {
  func.func @_pinn_kernel(%arg0: i32, %arg1: memref<1x5x128xf32, #tpu.memory_space<vmem>>, %arg2: memref<64x5xf32, #tpu.memory_space<vmem>>, %arg3: memref<64x1xf32, #tpu.memory_space<vmem>>, %arg4: memref<32x64xf32, #tpu.memory_space<vmem>>, %arg5: memref<32x1xf32, #tpu.memory_space<vmem>>, %arg6: memref<16x32xf32, #tpu.memory_space<vmem>>, %arg7: memref<16x1xf32, #tpu.memory_space<vmem>>, %arg8: memref<16x1xf32, #tpu.memory_space<vmem>>, %arg9: memref<1x1xf32, #tpu.memory_space<vmem>>, %arg10: memref<1x1x128xf32, #tpu.memory_space<vmem>>, %arg11: memref<1x1x128xf32, #tpu.memory_space<vmem>>) attributes {dimension_semantics = [#tpu.dimension_semantics<parallel>], iteration_bounds = array<i64: 1>, scalar_prefetch = 0 : i64, scratch_operands = 0 : i64, tpu.core_type = #tpu.core_type<tc>, window_params = [{transform_indices = @transform_0, window_bounds = array<i64: 1, 5, 128>}, {pipeline_mode = #tpu.pipeline_mode<synchronous>, transform_indices = @transform_1, window_bounds = array<i64: 64, 5>}, {pipeline_mode = #tpu.pipeline_mode<synchronous>, transform_indices = @transform_2, window_bounds = array<i64: 64, 1>}, {pipeline_mode = #tpu.pipeline_mode<synchronous>, transform_indices = @transform_3, window_bounds = array<i64: 32, 64>}, {pipeline_mode = #tpu.pipeline_mode<synchronous>, transform_indices = @transform_4, window_bounds = array<i64: 32, 1>}, {pipeline_mode = #tpu.pipeline_mode<synchronous>, transform_indices = @transform_5, window_bounds = array<i64: 16, 32>}, {pipeline_mode = #tpu.pipeline_mode<synchronous>, transform_indices = @transform_6, window_bounds = array<i64: 16, 1>}, {pipeline_mode = #tpu.pipeline_mode<synchronous>, transform_indices = @transform_7, window_bounds = array<i64: 16, 1>}, {pipeline_mode = #tpu.pipeline_mode<synchronous>, transform_indices = @transform_8, window_bounds = array<i64: 1, 1>}, {transform_indices = @transform_9, window_bounds = array<i64: 1, 1, 128>}, {transform_indices = @transform_10, window_bounds = array<i64: 1, 1, 128>}]} {
    %c0 = arith.constant 0 : index
    %c0_0 = arith.constant 0 : index
    %0 = vector.load %arg2[%c0, %c0_0] : memref<64x5xf32, #tpu.memory_space<vmem>>, vector<64x5xf32>
    %c0_1 = arith.constant 0 : index
    %c0_2 = arith.constant 0 : index
    %1 = vector.load %arg3[%c0_1, %c0_2] : memref<64x1xf32, #tpu.memory_space<vmem>>, vector<64x1xf32>
    %c0_3 = arith.constant 0 : index
    %c0_4 = arith.constant 0 : index
    %2 = vector.load %arg4[%c0_3, %c0_4] : memref<32x64xf32, #tpu.memory_space<vmem>>, vector<32x64xf32>
    %c0_5 = arith.constant 0 : index
    %c0_6 = arith.constant 0 : index
    %3 = vector.load %arg5[%c0_5, %c0_6] : memref<32x1xf32, #tpu.memory_space<vmem>>, vector<32x1xf32>
    %c0_7 = arith.constant 0 : index
    %c0_8 = arith.constant 0 : index
    %4 = vector.load %arg6[%c0_7, %c0_8] : memref<16x32xf32, #tpu.memory_space<vmem>>, vector<16x32xf32>
    %c0_9 = arith.constant 0 : index
    %c0_10 = arith.constant 0 : index
    %5 = vector.load %arg7[%c0_9, %c0_10] : memref<16x1xf32, #tpu.memory_space<vmem>>, vector<16x1xf32>
    %c0_11 = arith.constant 0 : index
    %c0_12 = arith.constant 0 : index
    %6 = vector.load %arg8[%c0_11, %c0_12] : memref<16x1xf32, #tpu.memory_space<vmem>>, vector<16x1xf32>
    %c0_13 = arith.constant 0 : index
    %c0_14 = arith.constant 0 : index
    %7 = vector.load %arg9[%c0_13, %c0_14] : memref<1x1xf32, #tpu.memory_space<vmem>>, vector<1x1xf32>
    %c0_i32 = arith.constant 0 : i32
    %8 = arith.index_cast %c0_i32 : i32 to index
    %c0_15 = arith.constant 0 : index
    %c0_16 = arith.constant 0 : index
    %9 = vector.load %arg1[%8, %c0_15, %c0_16] : memref<1x5x128xf32, #tpu.memory_space<vmem>>, vector<1x5x128xf32>
    %10 = vector.shape_cast %9 : vector<1x5x128xf32> to vector<5x128xf32>
    %cst = arith.constant dense<0.000000e+00> : vector<64x128xf32>
    %11 = tpu.matmul %0, %10, %cst {dimension_numbers = #tpu.dot_dimension_numbers<[1], [0], [0], [1], [0, 0, 1, 1], [], []>} : vector<64x5xf32>, vector<5x128xf32>, vector<64x128xf32> -> vector<64x128xf32>
    %12 = vector.broadcast %1 : vector<64x1xf32> to vector<64x128xf32>
    %13 = arith.addf %11, %12 : vector<64x128xf32>
    %cst_17 = arith.constant 0.000000e+00 : f32
    %14 = vector.broadcast %cst_17 : f32 to vector<64x128xf32>
    %15 = arith.maximumf %13, %14 : vector<64x128xf32>
    %cst_18 = arith.constant dense<0.000000e+00> : vector<32x128xf32>
    %16 = tpu.matmul %2, %15, %cst_18 {dimension_numbers = #tpu.dot_dimension_numbers<[1], [0], [0], [1], [0, 0, 1, 1], [], []>} : vector<32x64xf32>, vector<64x128xf32>, vector<32x128xf32> -> vector<32x128xf32>
    %17 = vector.broadcast %3 : vector<32x1xf32> to vector<32x128xf32>
    %18 = arith.addf %16, %17 : vector<32x128xf32>
    %cst_19 = arith.constant 0.000000e+00 : f32
    %19 = vector.broadcast %cst_19 : f32 to vector<32x128xf32>
    %20 = arith.maximumf %18, %19 : vector<32x128xf32>
    %cst_20 = arith.constant dense<0.000000e+00> : vector<16x128xf32>
    %21 = tpu.matmul %4, %20, %cst_20 {dimension_numbers = #tpu.dot_dimension_numbers<[1], [0], [0], [1], [0, 0, 1, 1], [], []>} : vector<16x32xf32>, vector<32x128xf32>, vector<16x128xf32> -> vector<16x128xf32>
    %22 = vector.broadcast %5 : vector<16x1xf32> to vector<16x128xf32>
    %23 = arith.addf %21, %22 : vector<16x128xf32>
    %cst_21 = arith.constant 0.000000e+00 : f32
    %24 = vector.broadcast %cst_21 : f32 to vector<16x128xf32>
    %25 = arith.maximumf %23, %24 : vector<16x128xf32>
    %26 = vector.broadcast %6 : vector<16x1xf32> to vector<16x128xf32>
    %27 = arith.mulf %26, %25 : vector<16x128xf32>
    %cst_22 = arith.constant dense<0.000000e+00> : vector<128xf32>
    %28 = vector.multi_reduction <add>, %27, %cst_22 [0] : vector<16x128xf32> to vector<128xf32>
    %29 = vector.shape_cast %28 : vector<128xf32> to vector<1x128xf32>
    %30 = vector.broadcast %7 : vector<1x1xf32> to vector<1x128xf32>
    %31 = arith.addf %29, %30 : vector<1x128xf32>
    %32 = math.exp %31 : vector<1x128xf32>
    %33 = arith.index_cast %c0_i32 : i32 to index
    %c0_23 = arith.constant 0 : index
    %c0_24 = arith.constant 0 : index
    %34 = vector.load %arg11[%33, %c0_23, %c0_24] : memref<1x1x128xf32, #tpu.memory_space<vmem>>, vector<1x1x128xf32>
    %35 = vector.shape_cast %34 : vector<1x1x128xf32> to vector<1x128xf32>
    %36 = vector.shape_cast %32 : vector<1x128xf32> to vector<1x1x128xf32>
    tpu.vector_store %arg11[%33, %c0_23, %c0_24], %36 {strides = array<i32>} : memref<1x1x128xf32, #tpu.memory_space<vmem>>, vector<1x1x128xf32>,
    %cst_25 = arith.constant -13.8155107 : f32
    %37 = vector.broadcast %cst_25 : f32 to vector<1x128xf32>
    %38 = arith.maximumf %31, %37 : vector<1x128xf32>
    %cst_26 = arith.constant -2.259000e+00 : f32
    %39 = vector.broadcast %cst_26 : f32 to vector<1x128xf32>
    %40 = arith.mulf %39, %38 : vector<1x128xf32>
    %41 = math.exp %40 : vector<1x128xf32>
    %cst_27 = arith.constant 5.583000e+01 : f32
    %42 = vector.broadcast %cst_27 : f32 to vector<1x128xf32>
    %43 = arith.mulf %42, %41 : vector<1x128xf32>
    %44 = arith.index_cast %c0_i32 : i32 to index
    %c0_28 = arith.constant 0 : index
    %c0_29 = arith.constant 0 : index
    %45 = vector.load %arg10[%44, %c0_28, %c0_29] : memref<1x1x128xf32, #tpu.memory_space<vmem>>, vector<1x1x128xf32>
    %46 = vector.shape_cast %45 : vector<1x1x128xf32> to vector<1x128xf32>
    %47 = vector.shape_cast %43 : vector<1x128xf32> to vector<1x1x128xf32>
    tpu.vector_store %arg10[%44, %c0_28, %c0_29], %47 {strides = array<i32>} : memref<1x1x128xf32, #tpu.memory_space<vmem>>, vector<1x1x128xf32>,
    %c1_i32 = arith.constant 1 : i32
    return
  }
  func.func @transform_0(%arg0: i32) -> (i32, i32, i32) {
    %c0_i32 = arith.constant 0 : i32
    %c0_i32_0 = arith.constant 0 : i32
    %c0_i32_1 = arith.constant 0 : i32
    return %arg0, %c0_i32, %c0_i32_0 : i32, i32, i32
  }
  func.func @transform_1(%arg0: i32) -> (i32, i32) {
    %c0_i32 = arith.constant 0 : i32
    %c0_i32_0 = arith.constant 0 : i32
    %c0_i32_1 = arith.constant 0 : i32
    return %c0_i32, %c0_i32_0 : i32, i32
  }
  func.func @transform_2(%arg0: i32) -> (i32, i32) {
    %c0_i32 = arith.constant 0 : i32
    %c0_i32_0 = arith.constant 0 : i32
    %c0_i32_1 = arith.constant 0 : i32
    return %c0_i32, %c0_i32_0 : i32, i32
  }
  func.func @transform_3(%arg0: i32) -> (i32, i32) {
    %c0_i32 = arith.constant 0 : i32
    %c0_i32_0 = arith.constant 0 : i32
    %c0_i32_1 = arith.constant 0 : i32
    return %c0_i32, %c0_i32_0 : i32, i32
  }
  func.func @transform_4(%arg0: i32) -> (i32, i32) {
    %c0_i32 = arith.constant 0 : i32
    %c0_i32_0 = arith.constant 0 : i32
    %c0_i32_1 = arith.constant 0 : i32
    return %c0_i32, %c0_i32_0 : i32, i32
  }
  func.func @transform_5(%arg0: i32) -> (i32, i32) {
    %c0_i32 = arith.constant 0 : i32
    %c0_i32_0 = arith.constant 0 : i32
    %c0_i32_1 = arith.constant 0 : i32
    return %c0_i32, %c0_i32_0 : i32, i32
  }
  func.func @transform_6(%arg0: i32) -> (i32, i32) {
    %c0_i32 = arith.constant 0 : i32
    %c0_i32_0 = arith.constant 0 : i32
    %c0_i32_1 = arith.constant 0 : i32
    return %c0_i32, %c0_i32_0 : i32, i32
  }
  func.func @transform_7(%arg0: i32) -> (i32, i32) {
    %c0_i32 = arith.constant 0 : i32
    %c0_i32_0 = arith.constant 0 : i32
    %c0_i32_1 = arith.constant 0 : i32
    return %c0_i32, %c0_i32_0 : i32, i32
  }
  func.func @transform_8(%arg0: i32) -> (i32, i32) {
    %c0_i32 = arith.constant 0 : i32
    %c0_i32_0 = arith.constant 0 : i32
    %c0_i32_1 = arith.constant 0 : i32
    return %c0_i32, %c0_i32_0 : i32, i32
  }
  func.func @transform_9(%arg0: i32) -> (i32, i32, i32) {
    %c0_i32 = arith.constant 0 : i32
    %c0_i32_0 = arith.constant 0 : i32
    %c0_i32_1 = arith.constant 0 : i32
    return %arg0, %c0_i32, %c0_i32_0 : i32, i32, i32
  }
  func.func @transform_10(%arg0: i32) -> (i32, i32, i32) {
    %c0_i32 = arith.constant 0 : i32
    %c0_i32_0 = arith.constant 0 : i32
    %c0_i32_1 = arith.constant 0 : i32
    return %arg0, %c0_i32, %c0_i32_0 : i32, i32, i32
  }
}

</mosaic_0001>

<llo_original>
// kernel: pinn_forward.1
$region0: #{pinn_forward.1}
  #allocation0 [shape = 'u32[]', space=smem, size = 0x4, offset = 0x4, fixed_abs, tag = 'smem constant byte address 0x4 - core index']
  #allocation1 [shape = 'u32[144,128]{1,0:T(1,128)}', space=vmem, size = 0x12000, scoped, tag = 'internal scratch']
  #allocation2 [shape = 'f32[1,1]{1,0:T(1,128)S(1)}', space=vmem, size = 0x200, scoped, tag = 'scoped memory for pinn_forward.1']
  %s0 = inlined_call_operand.vmem [shape: f32[1,5,128], index: 0, kind: input, shape index: {}]
  %s1 = inlined_call_operand.vmem [shape: f32[64,5], index: 1, kind: input, shape index: {}]
  %s2 = inlined_call_operand.vmem [shape: f32[64,1], index: 2, kind: input, shape index: {}]
  %s3 = inlined_call_operand.vmem [shape: f32[32,64], index: 3, kind: input, shape index: {}]
  %s4 = inlined_call_operand.vmem [shape: f32[32,1], index: 4, kind: input, shape index: {}]
  %s5 = inlined_call_operand.vmem [shape: f32[16,32], index: 5, kind: input, shape index: {}]
  %s6 = inlined_call_operand.vmem [shape: f32[16,1], index: 6, kind: input, shape index: {}]
  %s7 = inlined_call_operand.vmem [shape: f32[16,1], index: 7, kind: input, shape index: {}]
  %s8 = inlined_call_operand.<no memory space> [shape: f32[1,1], index: 8, kind: input, shape index: {}]
  %s9 = inlined_call_operand.vmem [shape: f32[1,1,128], index: 9, kind: output, shape index: {0}]
  %s10 = inlined_call_operand.vmem [shape: f32[1,1,128], index: 10, kind: output, shape index: {1}]
  %11 = xla_tuple %s9, %s10
  %s12 = sld [smem:[#allocation0]]
  $region54: #{pinn_forward.1} parent=0
    _
  %s14 = ssub.s32 1, %s12
  %s15 = scalar_select 0, %s14, %s12
  %v16 = vstv %s8
  %17 = vst [vmem:[#allocation2] sm:$0x1] %v16
  // Predicated region
  $region2: #{pinn_forward.1} parent=0 // pred_check
    _
  $region3: #{pinn_forward.1} parent=0 // pred_check_branch
    %19 = sbr.rel (0) target = $region5
  $region4: #{pinn_forward.1} parent=0 // pred_region
    _
  $region5: #{pinn_forward.1} parent=0 // pred_fallthru
    _
  // Predicated region
  $region6: #{pinn_forward.1} parent=0 // pred_check
    _
  $region7: #{pinn_forward.1} parent=0 // pred_check_branch
    %21 = sbr.rel (0) target = $region9
  $region8: #{pinn_forward.1} parent=0 // pred_region
    _
  $region9: #{pinn_forward.1} parent=0 // pred_fallthru
    _
  // Predicated region
  $region10: #{pinn_forward.1} parent=0 // pred_check
    _
  $region11: #{pinn_forward.1} parent=0 // pred_check_branch
    %23 = sbr.rel (0) target = $region13
  $region12: #{pinn_forward.1} parent=0 // pred_region
    _
  $region13: #{pinn_forward.1} parent=0 // pred_fallthru
    _
  // Predicated region
  $region14: #{pinn_forward.1} parent=0 // pred_check
    _
  $region15: #{pinn_forward.1} parent=0 // pred_check_branch
    %25 = sbr.rel (0) target = $region17
  $region16: #{pinn_forward.1} parent=0 // pred_region
    _
  $region17: #{pinn_forward.1} parent=0 // pred_fallthru
    _
  // Predicated region
  $region18: #{pinn_forward.1} parent=0 // pred_check
    _
  $region19: #{pinn_forward.1} parent=0 // pred_check_branch
    %27 = sbr.rel (0) target = $region21
  $region20: #{pinn_forward.1} parent=0 // pred_region
    _
  $region21: #{pinn_forward.1} parent=0 // pred_fallthru
    _
  // Predicated region
  $region22: #{pinn_forward.1} parent=0 // pred_check
    _
  $region23: #{pinn_forward.1} parent=0 // pred_check_branch
    %29 = sbr.rel (0) target = $region25
  $region24: #{pinn_forward.1} parent=0 // pred_region
    _
  $region25: #{pinn_forward.1} parent=0 // pred_fallthru
    _
  // Predicated region
  $region26: #{pinn_forward.1} parent=0 // pred_check
    _
  $region27: #{pinn_forward.1} parent=0 // pred_check_branch
    %31 = sbr.rel (0) target = $region29
  $region28: #{pinn_forward.1} parent=0 // pred_region
    _
  $region29: #{pinn_forward.1} parent=0 // pred_fallthru
    _
  // Predicated region
  $region30: #{pinn_forward.1} parent=0 // pred_check
    _
  $region31: #{pinn_forward.1} parent=0 // pred_check_branch
    %33 = sbr.rel (0) target = $region33
  $region32: #{pinn_forward.1} parent=0 // pred_region
    _
  $region33: #{pinn_forward.1} parent=0 // pred_fallthru
    _
  // Predicated region
  $region34: #{pinn_forward.1} parent=0 // pred_check
    _
  $region35: #{pinn_forward.1} parent=0 // pred_check_branch
    %35 = sbr.rel (0) target = $region37
  $region36: #{pinn_forward.1} parent=0 // pred_region
    _
  $region37: #{pinn_forward.1} parent=0 // pred_fallthru
    _
  %v36 = vld [vmem:[%s1] sm:$0xff]
  %v37 = vld [vmem:[%s1 + $0x8] sm:$0xff]
  %v38 = vld [vmem:[%s1 + $0x10] sm:$0xff]
  %v39 = vld [vmem:[%s1 + $0x18] sm:$0xff]
  %v40 = vld [vmem:[%s1 + $0x20] sm:$0xff]
  %v41 = vld [vmem:[%s1 + $0x28] sm:$0xff]
  %v42 = vld [vmem:[%s1 + $0x30] sm:$0xff]
  %v43 = vld [vmem:[%s1 + $0x38] sm:$0xff]
  %v44 = vld [vmem:[%s2] sm:$0xff]
  %v45 = vld [vmem:[%s2 + $0x8] sm:$0xff]
  %v46 = vld [vmem:[%s2 + $0x10] sm:$0xff]
  %v47 = vld [vmem:[%s2 + $0x18] sm:$0xff]
  %v48 = vld [vmem:[%s2 + $0x20] sm:$0xff]
  %v49 = vld [vmem:[%s2 + $0x28] sm:$0xff]
  %v50 = vld [vmem:[%s2 + $0x30] sm:$0xff]
  %v51 = vld [vmem:[%s2 + $0x38] sm:$0xff]
  %v52 = vld [vmem:[%s3] sm:$0xff]
  %v53 = vld [vmem:[%s3 + $0x8] sm:$0xff]
  %v54 = vld [vmem:[%s3 + $0x10] sm:$0xff]
  %v55 = vld [vmem:[%s3 + $0x18] sm:$0xff]
  %v56 = vld [vmem:[%s4] sm:$0xff]
  %v57 = vld [vmem:[%s4 + $0x8] sm:$0xff]
  %v58 = vld [vmem:[%s4 + $0x10] sm:$0xff]
  %v59 = vld [vmem:[%s4 + $0x18] sm:$0xff]
  %v60 = vld [vmem:[%s5] sm:$0xff]
  %v61 = vld [vmem:[%s5 + $0x8] sm:$0xff]
  %v62 = vld [vmem:[%s6] sm:$0xff]
  %v63 = vld [vmem:[%s6 + $0x8] sm:$0xff]
  %v64 = vld [vmem:[%s7] sm:$0xff]
  %v65 = vld [vmem:[%s7 + $0x8] sm:$0xff]
  %v66 = vld [vmem:[#allocation2] sm:$0x1]
  %v67 = vld [vmem:[%s0] sm:$0x1f]
  %69 = vset.pattern.permute.xlu0 0
  %70 = vperm.xlu0 %69, %v44
  %v71 = vpop.permute.xlu0 %70
  %74 = vset.pattern.permute.xlu0 0
  %75 = vperm.xlu0 %74, %v45
  %v76 = vpop.permute.xlu0 %75
  %79 = vset.pattern.permute.xlu0 0
  %80 = vperm.xlu0 %79, %v46
  %v81 = vpop.permute.xlu0 %80
  %84 = vset.pattern.permute.xlu0 0
  %85 = vperm.xlu0 %84, %v47
  %v86 = vpop.permute.xlu0 %85
  %89 = vset.pattern.permute.xlu0 0
  %90 = vperm.xlu0 %89, %v48
  %v91 = vpop.permute.xlu0 %90
  %94 = vset.pattern.permute.xlu0 0
  %95 = vperm.xlu0 %94, %v49
  %v96 = vpop.permute.xlu0 %95
  %99 = vset.pattern.permute.xlu0 0
  %100 = vperm.xlu0 %99, %v50
  %v101 = vpop.permute.xlu0 %100
  %104 = vset.pattern.permute.xlu0 0
  %105 = vperm.xlu0 %104, %v51
  %v106 = vpop.permute.xlu0 %105
  %vm108 = vcmask 39936
  %v110 = vsel %vm108, %v36, 0
  %v113 = vsel %vm108, %v37, 0
  %v116 = vsel %vm108, %v38, 0
  %v119 = vsel %vm108, %v39, 0
  %v122 = vsel %vm108, %v40, 0
  %v125 = vsel %vm108, %v41, 0
  %v128 = vsel %vm108, %v42, 0
  %v131 = vsel %vm108, %v43, 0
  %vm133 = vcmask 1044480
  %v135 = vsel %vm133, %v67, 0
  %137 = vmatprep.subr.mxu0 0.0
  %138 = vmatpush1.msra.mxu0 %v135
  %139 = vmatprep.subr.mxu0 0.0
  %140 = vmatpush1.msra.mxu0 0.0
  %141 = vmatprep.subr.mxu0 0.0
  %142 = vmatpush1.msra.mxu0 0.0
  %143 = vmatprep.subr.mxu0 0.0
  %144 = vmatpush1.msra.mxu0 0.0
  %145 = vmatprep.subr.mxu0 0.0
  %146 = vmatpush1.msra.mxu0 0.0
  %147 = vmatprep.subr.mxu0 0.0
  %148 = vmatpush1.msra.mxu0 0.0
  %149 = vmatprep.subr.mxu0 0.0
  %150 = vmatpush1.msra.mxu0 0.0
  %151 = vmatprep.subr.mxu0 0.0
  %152 = vmatpush1.msra.mxu0 0.0
  %153 = vmatprep.subr.mxu0 0.0
  %154 = vmatpush1.msra.mxu0 0.0
  %155 = vmatprep.subr.mxu0 0.0
  %156 = vmatpush1.msra.mxu0 0.0
  %157 = vmatprep.subr.mxu0 0.0
  %158 = vmatpush1.msra.mxu0 0.0
  %159 = vmatprep.subr.mxu0 0.0
  %160 = vmatpush1.msra.mxu0 0.0
  %161 = vmatprep.subr.mxu0 0.0
  %162 = vmatpush1.msra.mxu0 0.0
  %163 = vmatprep.subr.mxu0 0.0
  %164 = vmatpush1.msra.mxu0 0.0
  %165 = vmatprep.subr.mxu0 0.0
  %166 = vmatpush1.msra.mxu0 0.0
  %167 = vmatprep.subr.mxu0 0.0
  %168 = vmatpush1.msra.mxu0 0.0
  %169 = vmatprep.subr.mxu0 0.0
  %170 = vmatpush1.msra.mxu0 0.0
  %171 = vmatprep.subr.mxu0 0.0
  %172 = vmatpush1.msra.mxu0 0.0
  %173 = vmatprep.subr.mxu0 0.0
  %174 = vmatpush1.msra.mxu0 0.0
  %175 = vmatprep.subr.mxu0 0.0
  %176 = vmatpush1.msra.mxu0 0.0
  %177 = vmatprep.subr.mxu0 0.0
  %178 = vmatpush1.msra.mxu0 0.0
  %179 = vmatprep.subr.mxu0 0.0
  %180 = vmatpush1.msra.mxu0 0.0
  %181 = vmatprep.subr.mxu0 0.0
  %182 = vmatpush1.msra.mxu0 0.0
  %183 = vmatprep.subr.mxu0 0.0
  %184 = vmatpush1.msra.mxu0 0.0
  %185 = vmatprep.subr.mxu0 0.0
  %186 = vmatpush1.msra.mxu0 0.0
  %187 = vmatprep.subr.mxu0 0.0
  %188 = vmatpush1.msra.mxu0 0.0
  %189 = vmatprep.subr.mxu0 0.0
  %190 = vmatpush1.msra.mxu0 0.0
  %191 = vmatprep.subr.mxu0 0.0
  %192 = vmatpush1.msra.mxu0 0.0
  %193 = vmatprep.subr.mxu0 0.0
  %194 = vmatpush1.msra.mxu0 0.0
  %195 = vmatprep.subr.mxu0 0.0
  %196 = vmatpush1.msra.mxu0 0.0
  %197 = vmatprep.subr.mxu0 0.0
  %198 = vmatpush1.msra.mxu0 0.0
  %199 = vmatprep.subr.mxu0 0.0
  %200 = vmatpush1.msra.mxu0 0.0
  %201 = vmatprep.mubr.f32.mxu0 0.0
  %202 = vmatmul.mubr.f32.gmra.mrb[0].mxu0 %v110
  %v203 = vpop.f32.mrb[0].mxu0
  %v204 = vadd.f32 %v71, %v203
  %v205 = vpop.f32.mrb[0].mxu0
  %206 = vmatprep.mubr.f32.mxu0 0.0
  %207 = vmatmul.mubr.f32.gmra.mrb[0].mxu0 %v113
  %v208 = vpop.f32.mrb[0].mxu0
  %v209 = vadd.f32 %v76, %v208
  %v210 = vpop.f32.mrb[0].mxu0
  %211 = vmatprep.mubr.f32.mxu0 0.0
  %212 = vmatmul.mubr.f32.gmra.mrb[0].mxu0 %v116
  %v213 = vpop.f32.mrb[0].mxu0
  %v214 = vadd.f32 %v81, %v213
  %v215 = vpop.f32.mrb[0].mxu0
  %216 = vmatprep.mubr.f32.mxu0 0.0
  %217 = vmatmul.mubr.f32.gmra.mrb[0].mxu0 %v119
  %v218 = vpop.f32.mrb[0].mxu0
  %v219 = vadd.f32 %v86, %v218
  %v220 = vpop.f32.mrb[0].mxu0
  %221 = vmatprep.mubr.f32.mxu0 0.0
  %222 = vmatmul.mubr.f32.gmra.mrb[0].mxu0 %v122
  %v223 = vpop.f32.mrb[0].mxu0
  %v224 = vadd.f32 %v91, %v223
  %v225 = vpop.f32.mrb[0].mxu0
  %226 = vmatprep.mubr.f32.mxu0 0.0
  %227 = vmatmul.mubr.f32.gmra.mrb[0].mxu0 %v125
  %v228 = vpop.f32.mrb[0].mxu0
  %v229 = vadd.f32 %v96, %v228
  %v230 = vpop.f32.mrb[0].mxu0
  %231 = vmatprep.mubr.f32.mxu0 0.0
  %232 = vmatmul.mubr.f32.gmra.mrb[0].mxu0 %v128
  %v233 = vpop.f32.mrb[0].mxu0
  %v234 = vadd.f32 %v101, %v233
  %v235 = vpop.f32.mrb[0].mxu0
  %236 = vmatprep.mubr.f32.mxu0 0.0
  %237 = vmatmul.mubr.f32.gmra.mrb[0].mxu0 %v131
  %v238 = vpop.f32.mrb[0].mxu0
  %v239 = vadd.f32 %v106, %v238
  %v240 = vpop.f32.mrb[0].mxu0
  %241 = vdwg.mxu0
  %v242 = vmax.f32 %v204, 0.0
  %v243 = vmax.f32 %v209, 0.0
  %v244 = vmax.f32 %v214, 0.0
  %v245 = vmax.f32 %v219, 0.0
  %v246 = vmax.f32 %v224, 0.0
  %v247 = vmax.f32 %v229, 0.0
  %v248 = vmax.f32 %v234, 0.0
  %v249 = vmax.f32 %v239, 0.0
  %251 = vset.pattern.permute.xlu0 0
  %252 = vperm.xlu0 %251, %v56
  %v253 = vpop.permute.xlu0 %252
  %256 = vset.pattern.permute.xlu0 0
  %257 = vperm.xlu0 %256, %v57
  %v258 = vpop.permute.xlu0 %257
  %261 = vset.pattern.permute.xlu0 0
  %262 = vperm.xlu0 %261, %v58
  %v263 = vpop.permute.xlu0 %262
  %266 = vset.pattern.permute.xlu0 0
  %267 = vperm.xlu0 %266, %v59
  %v268 = vpop.permute.xlu0 %267
  %vm270 = vcmask 523264
  %v272 = vsel %vm270, %v52, 0
  %v275 = vsel %vm270, %v53, 0
  %v278 = vsel %vm270, %v54, 0
  %v281 = vsel %vm270, %v55, 0
  %283 = vmatprep.subr.mxu0 0.0
  %284 = vmatpush1.msra.mxu0 %v242
  %285 = vmatprep.subr.mxu0 0.0
  %286 = vmatpush1.msra.mxu0 %v243
  %287 = vmatprep.subr.mxu0 0.0
  %288 = vmatpush1.msra.mxu0 %v244
  %289 = vmatprep.subr.mxu0 0.0
  %290 = vmatpush1.msra.mxu0 %v245
  %291 = vmatprep.subr.mxu0 0.0
  %292 = vmatpush1.msra.mxu0 %v246
  %293 = vmatprep.subr.mxu0 0.0
  %294 = vmatpush1.msra.mxu0 %v247
  %295 = vmatprep.subr.mxu0 0.0
  %296 = vmatpush1.msra.mxu0 %v248
  %297 = vmatprep.subr.mxu0 0.0
  %298 = vmatpush1.msra.mxu0 %v249
  %299 = vmatprep.subr.mxu0 0.0
  %300 = vmatpush1.msra.mxu0 0.0
  %301 = vmatprep.subr.mxu0 0.0
  %302 = vmatpush1.msra.mxu0 0.0
  %303 = vmatprep.subr.mxu0 0.0
  %304 = vmatpush1.msra.mxu0 0.0
  %305 = vmatprep.subr.mxu0 0.0
  %306 = vmatpush1.msra.mxu0 0.0
  %307 = vmatprep.subr.mxu0 0.0
  %308 = vmatpush1.msra.mxu0 0.0
  %309 = vmatprep.subr.mxu0 0.0
  %310 = vmatpush1.msra.mxu0 0.0
  %311 = vmatprep.subr.mxu0 0.0
  %312 = vmatpush1.msra.mxu0 0.0
  %313 = vmatprep.subr.mxu0 0.0
  %314 = vmatpush1.msra.mxu0 0.0
  %315 = vmatprep.subr.mxu0 0.0
  %316 = vmatpush1.msra.mxu0 0.0
  %317 = vmatprep.subr.mxu0 0.0
  %318 = vmatpush1.msra.mxu0 0.0
  %319 = vmatprep.subr.mxu0 0.0
  %320 = vmatpush1.msra.mxu0 0.0
  %321 = vmatprep.subr.mxu0 0.0
  %322 = vmatpush1.msra.mxu0 0.0
  %323 = vmatprep.subr.mxu0 0.0
  %324 = vmatpush1.msra.mxu0 0.0
  %325 = vmatprep.subr.mxu0 0.0
  %326 = vmatpush1.msra.mxu0 0.0
  %327 = vmatprep.subr.mxu0 0.0
  %328 = vmatpush1.msra.mxu0 0.0
  %329 = vmatprep.subr.mxu0 0.0
  %330 = vmatpush1.msra.mxu0 0.0
  %331 = vmatprep.subr.mxu0 0.0
  %332 = vmatpush1.msra.mxu0 0.0
  %333 = vmatprep.subr.mxu0 0.0
  %334 = vmatpush1.msra.mxu0 0.0
  %335 = vmatprep.subr.mxu0 0.0
  %336 = vmatpush1.msra.mxu0 0.0
  %337 = vmatprep.subr.mxu0 0.0
  %338 = vmatpush1.msra.mxu0 0.0
  %339 = vmatprep.subr.mxu0 0.0
  %340 = vmatpush1.msra.mxu0 0.0
  %341 = vmatprep.subr.mxu0 0.0
  %342 = vmatpush1.msra.mxu0 0.0
  %343 = vmatprep.subr.mxu0 0.0
  %344 = vmatpush1.msra.mxu0 0.0
  %345 = vmatprep.subr.mxu0 0.0
  %346 = vmatpush1.msra.mxu0 0.0
  %347 = vmatprep.mubr.f32.mxu0 0.0
  %348 = vmatmul.mubr.f32.gmra.mrb[0].mxu0 %v272
  %v349 = vpop.f32.mrb[0].mxu0
  %v350 = vadd.f32 %v253, %v349
  %v351 = vpop.f32.mrb[0].mxu0
  %352 = vmatprep.mubr.f32.mxu0 0.0
  %353 = vmatmul.mubr.f32.gmra.mrb[0].mxu0 %v275
  %v354 = vpop.f32.mrb[0].mxu0
  %v355 = vadd.f32 %v258, %v354
  %v356 = vpop.f32.mrb[0].mxu0
  %357 = vmatprep.mubr.f32.mxu0 0.0
  %358 = vmatmul.mubr.f32.gmra.mrb[0].mxu0 %v278
  %v359 = vpop.f32.mrb[0].mxu0
  %v360 = vadd.f32 %v263, %v359
  %v361 = vpop.f32.mrb[0].mxu0
  %362 = vmatprep.mubr.f32.mxu0 0.0
  %363 = vmatmul.mubr.f32.gmra.mrb[0].mxu0 %v281
  %v364 = vpop.f32.mrb[0].mxu0
  %v365 = vadd.f32 %v268, %v364
  %v366 = vpop.f32.mrb[0].mxu0
  %367 = vdwg.mxu0
  %v368 = vmax.f32 %v350, 0.0
  %v369 = vmax.f32 %v355, 0.0
  %v370 = vmax.f32 %v360, 0.0
  %v371 = vmax.f32 %v365, 0.0
  %373 = vset.pattern.permute.xlu0 0
  %374 = vperm.xlu0 %373, %v62
  %v375 = vpop.permute.xlu0 %374
  %378 = vset.pattern.permute.xlu0 0
  %379 = vperm.xlu0 %378, %v63
  %v380 = vpop.permute.xlu0 %379
  %vm382 = vcmask 261120
  %v384 = vsel %vm382, %v60, 0
  %v387 = vsel %vm382, %v61, 0
  %389 = vmatprep.subr.mxu0 0.0
  %390 = vmatpush1.msra.mxu0 %v368
  %391 = vmatprep.subr.mxu0 0.0
  %392 = vmatpush1.msra.mxu0 %v369
  %393 = vmatprep.subr.mxu0 0.0
  %394 = vmatpush1.msra.mxu0 %v370
  %395 = vmatprep.subr.mxu0 0.0
  %396 = vmatpush1.msra.mxu0 %v371
  %397 = vmatprep.subr.mxu0 0.0
  %398 = vmatpush1.msra.mxu0 0.0
  %399 = vmatprep.subr.mxu0 0.0
  %400 = vmatpush1.msra.mxu0 0.0
  %401 = vmatprep.subr.mxu0 0.0
  %402 = vmatpush1.msra.mxu0 0.0
  %403 = vmatprep.subr.mxu0 0.0
  %404 = vmatpush1.msra.mxu0 0.0
  %405 = vmatprep.subr.mxu0 0.0
  %406 = vmatpush1.msra.mxu0 0.0
  %407 = vmatprep.subr.mxu0 0.0
  %408 = vmatpush1.msra.mxu0 0.0
  %409 = vmatprep.subr.mxu0 0.0
  %410 = vmatpush1.msra.mxu0 0.0
  %411 = vmatprep.subr.mxu0 0.0
  %412 = vmatpush1.msra.mxu0 0.0
  %413 = vmatprep.subr.mxu0 0.0
  %414 = vmatpush1.msra.mxu0 0.0
  %415 = vmatprep.subr.mxu0 0.0
  %416 = vmatpush1.msra.mxu0 0.0
  %417 = vmatprep.subr.mxu0 0.0
  %418 = vmatpush1.msra.mxu0 0.0
  %419 = vmatprep.subr.mxu0 0.0
  %420 = vmatpush1.msra.mxu0 0.0
  %421 = vmatprep.subr.mxu0 0.0
  %422 = vmatpush1.msra.mxu0 0.0
  %423 = vmatprep.subr.mxu0 0.0
  %424 = vmatpush1.msra.mxu0 0.0
  %425 = vmatprep.subr.mxu0 0.0
  %426 = vmatpush1.msra.mxu0 0.0
  %427 = vmatprep.subr.mxu0 0.0
  %428 = vmatpush1.msra.mxu0 0.0
  %429 = vmatprep.subr.mxu0 0.0
  %430 = vmatpush1.msra.mxu0 0.0
  %431 = vmatprep.subr.mxu0 0.0
  %432 = vmatpush1.msra.mxu0 0.0
  %433 = vmatprep.subr.mxu0 0.0
  %434 = vmatpush1.msra.mxu0 0.0
  %435 = vmatprep.subr.mxu0 0.0
  %436 = vmatpush1.msra.mxu0 0.0
  %437 = vmatprep.subr.mxu0 0.0
  %438 = vmatpush1.msra.mxu0 0.0
  %439 = vmatprep.subr.mxu0 0.0
  %440 = vmatpush1.msra.mxu0 0.0
  %441 = vmatprep.subr.mxu0 0.0
  %442 = vmatpush1.msra.mxu0 0.0
  %443 = vmatprep.subr.mxu0 0.0
  %444 = vmatpush1.msra.mxu0 0.0
  %445 = vmatprep.subr.mxu0 0.0
  %446 = vmatpush1.msra.mxu0 0.0
  %447 = vmatprep.subr.mxu0 0.0
  %448 = vmatpush1.msra.mxu0 0.0
  %449 = vmatprep.subr.mxu0 0.0
  %450 = vmatpush1.msra.mxu0 0.0
  %451 = vmatprep.subr.mxu0 0.0
  %452 = vmatpush1.msra.mxu0 0.0
  %453 = vmatprep.mubr.f32.mxu0 0.0
  %454 = vmatmul.mubr.f32.gmra.mrb[0].mxu0 %v384
  %v455 = vpop.f32.mrb[0].mxu0
  %v456 = vadd.f32 %v375, %v455
  %v457 = vpop.f32.mrb[0].mxu0
  %458 = vmatprep.mubr.f32.mxu0 0.0
  %459 = vmatmul.mubr.f32.gmra.mrb[0].mxu0 %v387
  %v460 = vpop.f32.mrb[0].mxu0
  %v461 = vadd.f32 %v380, %v460
  %v462 = vpop.f32.mrb[0].mxu0
  %463 = vdwg.mxu0
  %v464 = vmax.f32 %v456, 0.0
  %v465 = vmax.f32 %v461, 0.0
  %467 = vset.pattern.permute.xlu0 0
  %468 = vperm.xlu0 %467, %v64
  %v469 = vpop.permute.xlu0 %468
  %472 = vset.pattern.permute.xlu0 0
  %473 = vperm.xlu0 %472, %v65
  %v474 = vpop.permute.xlu0 %473
  %v476 = vmul.f32 %v469, %v464
  %v477 = vmul.f32 %v474, %v465
  %v478 = vadd.f32 %v476, %v477
  %v479 = vrot.slane %v478, 4
  %v480 = vadd.f32 %v478, %v479
  %v481 = vrot.slane %v480, 2
  %v482 = vadd.f32 %v480, %v481
  %v483 = vrot.slane %v482, 1
  %v484 = vadd.f32 %v482, %v483
  %486 = vset.pattern.permute.xlu0 0
  %487 = vperm.xlu0 %486, %v66
  %v488 = vpop.permute.xlu0 %487
  %v490 = vlaneseq
  %v491 = vshrl.u32 %v490, 7
  %v492 = vsub.s32 0, %v491
  %v493 = vrot.slane %v488, %v492
  %v494 = vadd.f32 %v484, %v493
  %v495 = vmul.f32 %v494, 1.442695
  %v496 = vpow.pop %v495
  %497 = vst [vmem:[%s10] sm:$0x1] %v496
  %v498 = vmax.f32 %v494, -13.815511
  %v499 = vmul.f32 %v498, -2.259
  %v500 = vmul.f32 %v499, 1.442695
  %v501 = vpow.pop %v500
  %v502 = vmul.f32 %v501, 55.83
  %503 = vst [vmem:[%s9] sm:$0x1] %v502
  // Predicated region
  $region38: #{pinn_forward.1} parent=0 // pred_check
    _
  $region39: #{pinn_forward.1} parent=0 // pred_check_branch
    %505 = sbr.rel (0) target = $region41
  $region40: #{pinn_forward.1} parent=0 // pred_region
    _
  $region41: #{pinn_forward.1} parent=0 // pred_fallthru
    _
  // Predicated region
  $region42: #{pinn_forward.1} parent=0 // pred_check
    _
  $region43: #{pinn_forward.1} parent=0 // pred_check_branch
    %507 = sbr.rel (0) target = $region45
  $region44: #{pinn_forward.1} parent=0 // pred_region
    _
  $region45: #{pinn_forward.1} parent=0 // pred_fallthru
    _
  // Predicated region
  $region46: #{pinn_forward.1} parent=0 // pred_check
    _
  $region47: #{pinn_forward.1} parent=0 // pred_check_branch
    %509 = sbr.rel (0) target = $region49
  $region48: #{pinn_forward.1} parent=0 // pred_region
    _
  $region49: #{pinn_forward.1} parent=0 // pred_fallthru
    _
  // Predicated region
  $region50: #{pinn_forward.1} parent=0 // pred_check
    _
  $region51: #{pinn_forward.1} parent=0 // pred_check_branch
    %511 = sbr.rel (0) target = $region53
  $region52: #{pinn_forward.1} parent=0 // pred_region
    _
  $region53: #{pinn_forward.1} parent=0 // pred_fallthru
    _

</llo_original>
